<compile_context>
chip_gen: v6e
topology: v6e:2x2x1
jax: 0.10.0
libtpu: 0.0.40
codegen_flags: <defaults>
</compile_context>

<pallas_src>
import functools

import jax
import jax.numpy as jnp
from jax.experimental import pallas as pl
from jax.experimental.pallas import tpu as pltpu


def _cdiv(a, b):
    return -(-a // b)


def _round_up(x, m):
    return _cdiv(x, m) * m


# ---------------------------------------------------------------------------
# One-time parameter preparation (outside the per-call path).
# ---------------------------------------------------------------------------
def prepare_params(params):
    """Cast weights to bf16 / biases to f32 and zero-pad widths up to 128.

    All padding is with zeros, so padded hidden units are exactly 0 after ReLU
    and padded q columns are exactly 0.  Do not break that invariant when
    refactoring (the wrapper slicing and the fused selection rely on it).
    """
    w1, b1, w2, b2, w3, b3 = params
    state_dim, h1 = w1.shape
    h2 = w2.shape[1]
    out_dim = w3.shape[1]

    h1p = _round_up(h1, 128)
    h2p = _round_up(h2, 128)
    outp = _round_up(out_dim, 128)

    def pad2(a, rows, cols):
        return jnp.pad(a, ((0, rows - a.shape[0]), (0, cols - a.shape[1])))

    return dict(
        w1=pad2(w1, state_dim, h1p).astype(jnp.bfloat16),
        b1=pad2(b1.reshape(1, -1), 1, h1p).astype(jnp.float32),
        w2=pad2(w2, h1p, h2p).astype(jnp.bfloat16),
        b2=pad2(b2.reshape(1, -1), 1, h2p).astype(jnp.float32),
        w3=pad2(w3, h2p, outp).astype(jnp.bfloat16),
        b3=pad2(b3.reshape(1, -1), 1, outp).astype(jnp.float32),
        state_dim=state_dim,
        out_dim=out_dim,
    )


# ---------------------------------------------------------------------------
# Tiling / grid selection (balanced + TensorCore aware).
# ---------------------------------------------------------------------------
def _choose_tiling(batch, batch_tile):
    nsteps = _cdiv(batch, batch_tile)
    # v7x has two TensorCores: the "parallel" grid axis only shards across both
    # cores (and double-buffers per core) with >= 4 steps.  Only force that
    # when each step still has >= 128 rows of work.
    if batch >= 4 * 128:
        nsteps = max(nsteps, 4)
    tile = _round_up(_cdiv(batch, nsteps), 16)   # 16: bf16 sublane packing
    nsteps = _cdiv(batch, tile)
    return tile, nsteps, tile * nsteps


def _pad_rows(a, rows):
    if a.shape[0] == rows:
        return a
    pad = ((0, rows - a.shape[0]),) + ((0, 0),) * (a.ndim - 1)
    return jnp.pad(a, pad)


# ---------------------------------------------------------------------------
# Kernels.
# ---------------------------------------------------------------------------
def _mlp_tile(x_ref, w1_ref, b1_ref, w2_ref, b2_ref, w3_ref, b3_ref):
    """Shared body: f32 state tile -> f32 q tile (bf16 MXU, f32 accumulate)."""
    x = x_ref[...].astype(jnp.bfloat16)                       # in-kernel cast
    h = jnp.dot(x, w1_ref[...], preferred_element_type=jnp.float32) + b1_ref[...]
    h = jnp.maximum(h, 0.0).astype(jnp.bfloat16)
    h = jnp.dot(h, w2_ref[...], preferred_element_type=jnp.float32) + b2_ref[...]
    h = jnp.maximum(h, 0.0).astype(jnp.bfloat16)
    return jnp.dot(h, w3_ref[...], preferred_element_type=jnp.float32) + b3_ref[...]


def _fwd_kernel(x_ref, w1_ref, b1_ref, w2_ref, b2_ref, w3_ref, b3_ref, q_ref):
    q = _mlp_tile(x_ref, w1_ref, b1_ref, w2_ref, b2_ref, w3_ref, b3_ref)
    q_ref[...] = q.astype(q_ref.dtype)


def _select_kernel(x_ref, a_ref, w1_ref, b1_ref, w2_ref, b2_ref, w3_ref, b3_ref,
                   qsel_ref, *, out_dim):
    q = _mlp_tile(x_ref, w1_ref, b1_ref, w2_ref, b2_ref, w3_ref, b3_ref)
    # Fused one-hot selection on the f32 q (before any downcast / HBM write).
    sel = jnp.sum(a_ref[...] * q[:, :out_dim], axis=-1, keepdims=True)
    qsel_ref[...] = sel


# ---------------------------------------------------------------------------
# Wrappers.
# ---------------------------------------------------------------------------
def _weight_specs(prep):
    state_dim = prep["state_dim"]
    h1p = prep["w1"].shape[1]
    h2p = prep["w2"].shape[1]
    outp = prep["w3"].shape[1]
    # Constant index_maps -> weights stay resident in VMEM across the grid.
    return [
        pl.BlockSpec((state_dim, h1p), lambda i: (0, 0)),   # W1
        pl.BlockSpec((1, h1p),         lambda i: (0, 0)),   # b1
        pl.BlockSpec((h1p, h2p),       lambda i: (0, 0)),   # W2
        pl.BlockSpec((1, h2p),         lambda i: (0, 0)),   # b2
        pl.BlockSpec((h2p, outp),      lambda i: (0, 0)),   # W3 (padded)
        pl.BlockSpec((1, outp),        lambda i: (0, 0)),   # b3 (padded)
    ]


def vanilla_q_multihead_forward(state, prep, *, batch_tile=1024,
                                q_dtype=jnp.bfloat16):
    """forward(state) -> q_values of shape (B, output_dim) in q_dtype.

    q_dtype=jnp.bfloat16 (default) halves the dominant HBM writeback; pass
    jnp.float32 if downstream Q-targets need full precision.
    """
    B, state_dim = state.shape
    assert state_dim == prep["state_dim"]
    out_dim = prep["out_dim"]
    outp = prep["w3"].shape[1]

    tile, nsteps, Bp = _choose_tiling(B, batch_tile)
    x = _pad_rows(state.astype(jnp.float32), Bp)

    q = pl.pallas_call(
        _fwd_kernel,
        grid=(nsteps,),
        in_specs=[pl.BlockSpec((tile, state_dim), lambda i: (i, 0))]
                 + _weight_specs(prep),
        out_specs=pl.BlockSpec((tile, outp), lambda i: (i, 0)),
        out_shape=jax.ShapeDtypeStruct((Bp, outp), q_dtype),
        compiler_params=pltpu.CompilerParams(
            dimension_semantics=("parallel",)),
    )(x, prep["w1"], prep["b1"], prep["w2"], prep["b2"], prep["w3"], prep["b3"])

    return q[:B, :out_dim]


def get_q_values(state, action_batch, prep, *, batch_tile=1024):
    """VanillaQValueMultiHeadNetwork.get_q_values.

    2-D one-hot action_batch (B, A): fused kernel, returns (B,) f32.
    3-D available-actions batch (B, K, A): forward kernel + einsum, (B, K) f32.
    """
    out_dim = prep["out_dim"]
    assert action_batch.shape[-1] == out_dim

    if action_batch.ndim == 3:
        # TODO(synk): the K-way selection could also be fused in-kernel; the
        # full q row is needed per available action anyway, so the win is small.
        q = vanilla_q_multihead_forward(state, prep, batch_tile=batch_tile,
                                        q_dtype=jnp.float32)
        return jnp.einsum("bka,ba->bk", action_batch.astype(jnp.float32), q)

    B, state_dim = state.shape
    assert state_dim == prep["state_dim"]
    tile, nsteps, Bp = _choose_tiling(B, batch_tile)
    x = _pad_rows(state.astype(jnp.float32), Bp)
    a = _pad_rows(action_batch.astype(jnp.float32), Bp)

    qsel = pl.pallas_call(
        functools.partial(_select_kernel, out_dim=out_dim),
        grid=(nsteps,),
        in_specs=[pl.BlockSpec((tile, state_dim), lambda i: (i, 0)),
                  pl.BlockSpec((tile, out_dim),   lambda i: (i, 0))]
                 + _weight_specs(prep),
        out_specs=pl.BlockSpec((tile, 1), lambda i: (i, 0)),
        out_shape=jax.ShapeDtypeStruct((Bp, 1), jnp.float32),
        compiler_params=pltpu.CompilerParams(
            dimension_semantics=("parallel",)),
    )(x, a, prep["w1"], prep["b1"], prep["w2"], prep["b2"], prep["w3"],
      prep["b3"])

    return qsel[:B, 0]


# ---------------------------------------------------------------------------
# Parameter init + references (for the self-check below).
# ---------------------------------------------------------------------------
def init_params(key, state_dim, hidden_dims, output_dim):
    """Deterministic synthetic parameters, weights stored as (in_dim, out_dim)."""
    dims = [state_dim] + list(hidden_dims) + [output_dim]
    params = []
    for i in range(len(dims) - 1):
        key, kw, kb = jax.random.split(key, 3)
        scale = 1.0 / jnp.sqrt(jnp.float32(dims[i]))
        w = jax.random.uniform(kw, (dims[i], dims[i + 1]), jnp.float32,
                               minval=-scale, maxval=scale)
        b = jax.random.uniform(kb, (1, dims[i + 1]), jnp.float32,
                               minval=-scale, maxval=scale)
        params += [w, b]
    return tuple(params)


def _reference_bf16(state, params):
    """Same bf16-quantized math as the kernel (f32 accumulate)."""
    w1, b1, w2, b2, w3, b3 = params
    bf = jnp.bfloat16
    h = jnp.dot(state.astype(bf), w1.astype(bf),
                preferred_element_type=jnp.float32) + b1
    h = jnp.maximum(h, 0.0)
    h = jnp.dot(h.astype(bf), w2.astype(bf),
                preferred_element_type=jnp.float32) + b2
    h = jnp.maximum(h, 0.0)
    return jnp.dot(h.astype(bf), w3.astype(bf),
                   preferred_element_type=jnp.float32) + b3


def _reference_f32(state, params):
    w1, b1, w2, b2, w3, b3 = params
    h = jnp.maximum(state @ w1 + b1, 0.0)
    h = jnp.maximum(h @ w2 + b2, 0.0)
    return h @ w3 + b3


if __name__ == "__main__":
    state_dim = 32
    hidden_dims = [64, 64]
    output_dim = 16      # == action_dim for the one-hot multi-head network
    batch = 20           # deliberately not a multiple of the tile -> pad path

    key = jax.random.PRNGKey(0)
    k_params, k_state, k_act, k_state2, k_act2 = jax.random.split(key, 5)

    raw_params = init_params(k_params, state_dim, hidden_dims, output_dim)
    prep = prepare_params(raw_params)   # one-time cast/pad, outside hot path

    state = jax.random.normal(k_state, (batch, state_dim), jnp.float32)
    action_idx = jax.random.randint(k_act, (batch,), 0, output_dim)
    action_onehot = jax.nn.one_hot(action_idx, output_dim, dtype=jnp.float32)

    q_all = vanilla_q_multihead_forward(state, prep)       # (B, 16) bf16
    q_sel = get_q_values(state, action_onehot, prep)       # (B,)    f32 (fused)
    q_all = jax.block_until_ready(q_all)
    q_sel = jax.block_until_ready(q_sel)

    assert q_all.shape == (batch, output_dim)
    assert q_sel.shape == (batch,)

    q_ref_bf = _reference_bf16(state, raw_params)
    q_ref_f32 = _reference_f32(state, raw_params)

    # Default forward output is bf16: check against the bf16-math reference with
    # bf16-level tolerance, plus a loose f32 sanity check.
    assert jnp.allclose(q_all.astype(jnp.float32), q_ref_bf, atol=2e-2, rtol=2e-2)
    assert jnp.allclose(q_all.astype(jnp.float32), q_ref_f32, atol=5e-2, rtol=5e-2)

    # Fused one-hot selection runs on the in-kernel f32 accumulator -> tight.
    assert jnp.allclose(q_sel, jnp.sum(action_onehot * q_ref_bf, axis=-1),
                        atol=1e-3, rtol=1e-3)

    # Exact-parity forward option (q_dtype=f32) stays tight.
    q_all_f32 = vanilla_q_multihead_forward(state, prep, q_dtype=jnp.float32)
    assert jnp.allclose(q_all_f32, q_ref_bf, atol=1e-3, rtol=1e-3)

    # 3-D available-actions branch.
    K = 5
    avail_idx = jax.random.randint(k_act2, (batch, K), 0, output_dim)
    avail_onehot = jax.nn.one_hot(avail_idx, output_dim, dtype=jnp.float32)
    q_avail = get_q_values(state, avail_onehot, prep)
    assert q_avail.shape == (batch, K)
    assert jnp.allclose(q_avail,
                        jnp.einsum("bka,ba->bk", avail_onehot, q_ref_bf),
                        atol=1e-3, rtol=1e-3)

    # Multi-step grid + batch-padding path (forces >1 "parallel" grid step).
    batch2 = 300
    state2 = jax.random.normal(k_state2, (batch2, state_dim), jnp.float32)
    idx2 = jax.random.randint(k_act, (batch2,), 0, output_dim)
    onehot2 = jax.nn.one_hot(idx2, output_dim, dtype=jnp.float32)
    q2 = vanilla_q_multihead_forward(state2, prep, batch_tile=128,
                                     q_dtype=jnp.float32)
    s2 = get_q_values(state2, onehot2, prep, batch_tile=128)
    ref2 = _reference_bf16(state2, raw_params)
    assert q2.shape == (batch2, output_dim)
    assert jnp.allclose(q2, ref2, atol=1e-3, rtol=1e-3)
    assert jnp.allclose(s2, jnp.sum(onehot2 * ref2, axis=-1),
                        atol=1e-3, rtol=1e-3)

    print("KERNEL_OK")
</pallas_src>

<mosaic_0001>
module attributes {stable_mosaic.version = 11 : i64} {
  func.func @_fwd_kernel(%arg0: i32, %arg1: memref<32x32xf32, #tpu.memory_space<vmem>>, %arg2: memref<32x128xbf16, #tpu.memory_space<vmem>>, %arg3: memref<1x128xf32, #tpu.memory_space<vmem>>, %arg4: memref<128x128xbf16, #tpu.memory_space<vmem>>, %arg5: memref<1x128xf32, #tpu.memory_space<vmem>>, %arg6: memref<128x128xbf16, #tpu.memory_space<vmem>>, %arg7: memref<1x128xf32, #tpu.memory_space<vmem>>, %arg8: memref<32x128xbf16, #tpu.memory_space<vmem>>) attributes {dimension_semantics = [#tpu.dimension_semantics<parallel>], iteration_bounds = array<i64: 1>, scalar_prefetch = 0 : i64, scratch_operands = 0 : i64, tpu.core_type = #tpu.core_type<tc>, window_params = [{transform_indices = @transform_0, window_bounds = array<i64: 32, 32>}, {pipeline_mode = #tpu.pipeline_mode<synchronous>, transform_indices = @transform_1, window_bounds = array<i64: 32, 128>}, {pipeline_mode = #tpu.pipeline_mode<synchronous>, transform_indices = @transform_2, window_bounds = array<i64: 1, 128>}, {pipeline_mode = #tpu.pipeline_mode<synchronous>, transform_indices = @transform_3, window_bounds = array<i64: 128, 128>}, {pipeline_mode = #tpu.pipeline_mode<synchronous>, transform_indices = @transform_4, window_bounds = array<i64: 1, 128>}, {pipeline_mode = #tpu.pipeline_mode<synchronous>, transform_indices = @transform_5, window_bounds = array<i64: 128, 128>}, {pipeline_mode = #tpu.pipeline_mode<synchronous>, transform_indices = @transform_6, window_bounds = array<i64: 1, 128>}, {transform_indices = @transform_7, window_bounds = array<i64: 32, 128>}]} {
    %c0 = arith.constant 0 : index
    %c0_0 = arith.constant 0 : index
    %0 = vector.load %arg1[%c0, %c0_0] : memref<32x32xf32, #tpu.memory_space<vmem>>, vector<32x32xf32>
    %1 = arith.truncf %0 : vector<32x32xf32> to vector<32x32xbf16>
    %c0_1 = arith.constant 0 : index
    %c0_2 = arith.constant 0 : index
    %2 = vector.load %arg2[%c0_1, %c0_2] : memref<32x128xbf16, #tpu.memory_space<vmem>>, vector<32x128xbf16>
    %cst = arith.constant dense<0.000000e+00> : vector<32x128xf32>
    %3 = tpu.matmul %1, %2, %cst {dimension_numbers = #tpu.dot_dimension_numbers<[1], [0], [0], [1], [0, 0, 1, 1], [], []>} : vector<32x32xbf16>, vector<32x128xbf16>, vector<32x128xf32> -> vector<32x128xf32>
    %c0_3 = arith.constant 0 : index
    %c0_4 = arith.constant 0 : index
    %4 = vector.load %arg3[%c0_3, %c0_4] : memref<1x128xf32, #tpu.memory_space<vmem>>, vector<1x128xf32>
    %5 = vector.broadcast %4 : vector<1x128xf32> to vector<32x128xf32>
    %6 = arith.addf %3, %5 : vector<32x128xf32>
    %cst_5 = arith.constant 0.000000e+00 : f32
    %7 = vector.broadcast %cst_5 : f32 to vector<32x128xf32>
    %8 = arith.maximumf %6, %7 : vector<32x128xf32>
    %9 = arith.truncf %8 : vector<32x128xf32> to vector<32x128xbf16>
    %c0_6 = arith.constant 0 : index
    %c0_7 = arith.constant 0 : index
    %10 = vector.load %arg4[%c0_6, %c0_7] : memref<128x128xbf16, #tpu.memory_space<vmem>>, vector<128x128xbf16>
    %cst_8 = arith.constant dense<0.000000e+00> : vector<32x128xf32>
    %11 = tpu.matmul %9, %10, %cst_8 {dimension_numbers = #tpu.dot_dimension_numbers<[1], [0], [0], [1], [0, 0, 1, 1], [], []>} : vector<32x128xbf16>, vector<128x128xbf16>, vector<32x128xf32> -> vector<32x128xf32>
    %c0_9 = arith.constant 0 : index
    %c0_10 = arith.constant 0 : index
    %12 = vector.load %arg5[%c0_9, %c0_10] : memref<1x128xf32, #tpu.memory_space<vmem>>, vector<1x128xf32>
    %13 = vector.broadcast %12 : vector<1x128xf32> to vector<32x128xf32>
    %14 = arith.addf %11, %13 : vector<32x128xf32>
    %cst_11 = arith.constant 0.000000e+00 : f32
    %15 = vector.broadcast %cst_11 : f32 to vector<32x128xf32>
    %16 = arith.maximumf %14, %15 : vector<32x128xf32>
    %17 = arith.truncf %16 : vector<32x128xf32> to vector<32x128xbf16>
    %c0_12 = arith.constant 0 : index
    %c0_13 = arith.constant 0 : index
    %18 = vector.load %arg6[%c0_12, %c0_13] : memref<128x128xbf16, #tpu.memory_space<vmem>>, vector<128x128xbf16>
    %cst_14 = arith.constant dense<0.000000e+00> : vector<32x128xf32>
    %19 = tpu.matmul %17, %18, %cst_14 {dimension_numbers = #tpu.dot_dimension_numbers<[1], [0], [0], [1], [0, 0, 1, 1], [], []>} : vector<32x128xbf16>, vector<128x128xbf16>, vector<32x128xf32> -> vector<32x128xf32>
    %c0_15 = arith.constant 0 : index
    %c0_16 = arith.constant 0 : index
    %20 = vector.load %arg7[%c0_15, %c0_16] : memref<1x128xf32, #tpu.memory_space<vmem>>, vector<1x128xf32>
    %21 = vector.broadcast %20 : vector<1x128xf32> to vector<32x128xf32>
    %22 = arith.addf %19, %21 : vector<32x128xf32>
    %23 = arith.truncf %22 : vector<32x128xf32> to vector<32x128xbf16>
    %c0_17 = arith.constant 0 : index
    %c0_18 = arith.constant 0 : index
    %24 = vector.load %arg8[%c0_17, %c0_18] : memref<32x128xbf16, #tpu.memory_space<vmem>>, vector<32x128xbf16>
    tpu.vector_store %arg8[%c0_17, %c0_18], %23 {strides = array<i32>} : memref<32x128xbf16, #tpu.memory_space<vmem>>, vector<32x128xbf16>,
    return
  }
  func.func @transform_0(%arg0: i32) -> (i32, i32) {
    %c0_i32 = arith.constant 0 : i32
    %c0_i32_0 = arith.constant 0 : i32
    return %arg0, %c0_i32 : i32, i32
  }
  func.func @transform_1(%arg0: i32) -> (i32, i32) {
    %c0_i32 = arith.constant 0 : i32
    %c0_i32_0 = arith.constant 0 : i32
    %c0_i32_1 = arith.constant 0 : i32
    return %c0_i32, %c0_i32_0 : i32, i32
  }
  func.func @transform_2(%arg0: i32) -> (i32, i32) {
    %c0_i32 = arith.constant 0 : i32
    %c0_i32_0 = arith.constant 0 : i32
    %c0_i32_1 = arith.constant 0 : i32
    return %c0_i32, %c0_i32_0 : i32, i32
  }
  func.func @transform_3(%arg0: i32) -> (i32, i32) {
    %c0_i32 = arith.constant 0 : i32
    %c0_i32_0 = arith.constant 0 : i32
    %c0_i32_1 = arith.constant 0 : i32
    return %c0_i32, %c0_i32_0 : i32, i32
  }
  func.func @transform_4(%arg0: i32) -> (i32, i32) {
    %c0_i32 = arith.constant 0 : i32
    %c0_i32_0 = arith.constant 0 : i32
    %c0_i32_1 = arith.constant 0 : i32
    return %c0_i32, %c0_i32_0 : i32, i32
  }
  func.func @transform_5(%arg0: i32) -> (i32, i32) {
    %c0_i32 = arith.constant 0 : i32
    %c0_i32_0 = arith.constant 0 : i32
    %c0_i32_1 = arith.constant 0 : i32
    return %c0_i32, %c0_i32_0 : i32, i32
  }
  func.func @transform_6(%arg0: i32) -> (i32, i32) {
    %c0_i32 = arith.constant 0 : i32
    %c0_i32_0 = arith.constant 0 : i32
    %c0_i32_1 = arith.constant 0 : i32
    return %c0_i32, %c0_i32_0 : i32, i32
  }
  func.func @transform_7(%arg0: i32) -> (i32, i32) {
    %c0_i32 = arith.constant 0 : i32
    %c0_i32_0 = arith.constant 0 : i32
    return %arg0, %c0_i32 : i32, i32
  }
}

</mosaic_0001>

<llo_original>
// kernel: tpu_custom_call.1
$region0: #{tpu_custom_call.1}
  #allocation0 [shape = 'u32[]', space=smem, size = 0x4, offset = 0x4, fixed_abs, tag = 'smem constant byte address 0x4 - core index']
  #allocation1 [shape = 'u32[144,128]{1,0:T(1,128)}', space=vmem, size = 0x12000, scoped, tag = 'internal scratch']
  %s0 = inlined_call_operand.hbm [shape: f32[32,32], index: 0, kind: input, shape index: {}]
  %s1 = inlined_call_operand.hbm [shape: bf16[32,128], index: 1, kind: input, shape index: {}]
  %s2 = inlined_call_operand.vmem [shape: f32[1,128], index: 2, kind: input, shape index: {}]
  %s3 = inlined_call_operand.hbm [shape: bf16[128,128], index: 3, kind: input, shape index: {}]
  %s4 = inlined_call_operand.vmem [shape: f32[1,128], index: 4, kind: input, shape index: {}]
  %s5 = inlined_call_operand.hbm [shape: bf16[128,128], index: 5, kind: input, shape index: {}]
  %s6 = inlined_call_operand.vmem [shape: f32[1,128], index: 6, kind: input, shape index: {}]
  %s7 = inlined_call_operand.hbm [shape: bf16[32,128], index: 7, kind: output, shape index: {}]
  %s8 = sld [smem:[#allocation0]]
  $region54: #{tpu_custom_call.1} parent=0
    _
  %s10 = ssub.s32 1, %s8
  %s11 = scalar_select 0, %s10, %s8
  $region1: #{tpu_custom_call.1} parent=0
    #allocation2 [shape = 'u8[16384]{0}', space=vmem, size = 0x4000, scoped, tag = 'input window, operand 0, single buffered']
    #allocation3 [shape = 's32[1]{0}', space=sflag, size = 0x4, scoped, tag = 'scoped memory for tpu_custom_call.1']
    #allocation4 [shape = 's32[1]{0}', space=sflag, size = 0x4, scoped, tag = 'scoped memory for tpu_custom_call.1']
    #allocation5 [shape = 'u8[8192]{0}', space=vmem, size = 0x2000, scoped, tag = 'input window, operand 1, single buffered']
    #allocation6 [shape = 's32[1]{0}', space=sflag, size = 0x4, scoped, tag = 'scoped memory for tpu_custom_call.1']
    #allocation7 [shape = 'u8[32768]{0}', space=vmem, size = 0x8000, scoped, tag = 'input window, operand 3, single buffered']
    #allocation8 [shape = 'u8[32768]{0}', space=vmem, size = 0x8000, scoped, tag = 'input window, operand 5, single buffered']
    #allocation9 [shape = 's32[1]{0}', space=sflag, size = 0x4, scoped, tag = 'scoped memory for tpu_custom_call.1']
    #allocation10 [shape = 'u8[8192]{0}', space=vmem, size = 0x2000, scoped, tag = 'output window, operand 0, single buffered']
    %12 = vsyncpa [#allocation3], 0
    %13 = vsyncpa [#allocation6], 0
    %14 = vsyncpa [#allocation9], 0
    %15 = vsyncpa [#allocation4], 0
    // Predicated region
    $region2: #{tpu_custom_call.1} parent=1 // pred_check
      _
    $region3: #{tpu_custom_call.1} parent=1 // pred_check_branch
      %17 = sbr.rel (0) target = $region5
    $region4: #{tpu_custom_call.1} parent=1 // pred_region
      %s19 = ssub.s32 512, 512
      %20 = vsyncadd [#allocation3], %s19
      %s21 = sshll.u32 [#allocation2], 4
      %s22 = int_to_ptr.vmem [resolvable:$true] %s21
      %27 = dma.hbm_to_vmem [thread:$0]  %s0, 512, %s22, [#allocation3], 128, 128, 8
    $region5: #{tpu_custom_call.1} parent=1 // pred_fallthru
      _
    // Predicated region
    $region6: #{tpu_custom_call.1} parent=1 // pred_check
      _
    $region7: #{tpu_custom_call.1} parent=1 // pred_check_branch
      %29 = sbr.rel (0) target = $region9
    $region8: #{tpu_custom_call.1} parent=1 // pred_region
      %s31 = ssub.s32 256, 256
      %32 = vsyncadd [#allocation6], %s31
      %s33 = sshll.u32 [#allocation5], 4
      %s34 = int_to_ptr.vmem [resolvable:$true] %s33
      %39 = dma.hbm_to_vmem [thread:$0]  %s1, 256, %s34, [#allocation6], 64, 64, 4
    $region9: #{tpu_custom_call.1} parent=1 // pred_fallthru
      _
    // Predicated region
    $region10: #{tpu_custom_call.1} parent=1 // pred_check
      _
    $region11: #{tpu_custom_call.1} parent=1 // pred_check_branch
      %41 = sbr.rel (0) target = $region13
    $region12: #{tpu_custom_call.1} parent=1 // pred_region
      _
    $region13: #{tpu_custom_call.1} parent=1 // pred_fallthru
      _
    // Predicated region
    $region14: #{tpu_custom_call.1} parent=1 // pred_check
      _
    $region15: #{tpu_custom_call.1} parent=1 // pred_check_branch
      %43 = sbr.rel (0) target = $region17
    $region16: #{tpu_custom_call.1} parent=1 // pred_region
      %s45 = ssub.s32 1024, 1024
      %46 = vsyncadd [#allocation6], %s45
      %s47 = sshll.u32 [#allocation7], 4
      %s48 = int_to_ptr.vmem [resolvable:$true] %s47
      %53 = dma.hbm_to_vmem [thread:$0]  %s3, 1024, %s48, [#allocation6], 64, 64, 4
    $region17: #{tpu_custom_call.1} parent=1 // pred_fallthru
      _
    // Predicated region
    $region18: #{tpu_custom_call.1} parent=1 // pred_check
      _
    $region19: #{tpu_custom_call.1} parent=1 // pred_check_branch
      %55 = sbr.rel (0) target = $region21
    $region20: #{tpu_custom_call.1} parent=1 // pred_region
      _
    $region21: #{tpu_custom_call.1} parent=1 // pred_fallthru
      _
    // Predicated region
    $region22: #{tpu_custom_call.1} parent=1 // pred_check
      _
    $region23: #{tpu_custom_call.1} parent=1 // pred_check_branch
      %57 = sbr.rel (0) target = $region25
    $region24: #{tpu_custom_call.1} parent=1 // pred_region
      %s59 = ssub.s32 1024, 1024
      %60 = vsyncadd [#allocation9], %s59
      %s61 = sshll.u32 [#allocation8], 4
      %s62 = int_to_ptr.vmem [resolvable:$true] %s61
      %67 = dma.hbm_to_vmem [thread:$0]  %s5, 1024, %s62, [#allocation9], 64, 64, 4
    $region25: #{tpu_custom_call.1} parent=1 // pred_fallthru
      _
    // Predicated region
    $region26: #{tpu_custom_call.1} parent=1 // pred_check
      _
    $region27: #{tpu_custom_call.1} parent=1 // pred_check_branch
      %69 = sbr.rel (0) target = $region29
    $region28: #{tpu_custom_call.1} parent=1 // pred_region
      _
    $region29: #{tpu_custom_call.1} parent=1 // pred_fallthru
      _
    // Predicated region
    $region30: #{tpu_custom_call.1} parent=1 // pred_check
      _
    $region31: #{tpu_custom_call.1} parent=1 // pred_check_branch
      %71 = sbr.rel (0) target = $region33
    $region32: #{tpu_custom_call.1} parent=1 // pred_region
      %72 = dma.done [#allocation3], 512
    $region33: #{tpu_custom_call.1} parent=1 // pred_fallthru
      _
    // Predicated region
    $region34: #{tpu_custom_call.1} parent=1 // pred_check
      _
    $region35: #{tpu_custom_call.1} parent=1 // pred_check_branch
      %74 = sbr.rel (0) target = $region37
    $region36: #{tpu_custom_call.1} parent=1 // pred_region
      %75 = dma.done [#allocation6], 256
    $region37: #{tpu_custom_call.1} parent=1 // pred_fallthru
      _
    // Predicated region
    $region38: #{tpu_custom_call.1} parent=1 // pred_check
      _
    $region39: #{tpu_custom_call.1} parent=1 // pred_check_branch
      %77 = sbr.rel (0) target = $region41
    $region40: #{tpu_custom_call.1} parent=1 // pred_region
      %78 = dma.done [#allocation6], 1024
    $region41: #{tpu_custom_call.1} parent=1 // pred_fallthru
      _
    // Predicated region
    $region42: #{tpu_custom_call.1} parent=1 // pred_check
      _
    $region43: #{tpu_custom_call.1} parent=1 // pred_check_branch
      %80 = sbr.rel (0) target = $region45
    $region44: #{tpu_custom_call.1} parent=1 // pred_region
      %81 = dma.done [#allocation9], 1024
    $region45: #{tpu_custom_call.1} parent=1 // pred_fallthru
      _
    %v83 = vld [vmem:[#allocation2] sm:$0xff]
    %v84 = vld [vmem:[#allocation2 + $0x8] sm:$0xff]
    %v85 = vld [vmem:[#allocation2 + $0x10] sm:$0xff]
    %v86 = vld [vmem:[#allocation2 + $0x18] sm:$0xff]
    %v87 = vpack.c.bf16 %v84, %v83
    %v88 = vpack.c.bf16 %v86, %v85
    %v89 = vld [vmem:[#allocation5] sm:$0xf]
    %v90 = vld [vmem:[#allocation5 + $0x4] sm:$0xf]
    %v91 = vld [vmem:[#allocation5 + $0x8] sm:$0xf]
    %v92 = vld [vmem:[#allocation5 + $0xc] sm:$0xf]
    %v93 = vld [vmem:[%s2] sm:$0x1]
    %v95 = vlaneseq
    %v96 = vshrl.u32 %v95, 7
    %v97 = vsub.s32 0, %v96
    %v98 = vrot.slane %v93, %v97
    %v104 = vunpack.c.l.b16 %v89
    %v105 = vunpack.c.l.b16 %v90
    %v106 = vunpack.c.l.b16 %v91
    %v107 = vunpack.c.l.b16 %v92
    %v108 = vpack.c.b16 %v105, %v104
    %v109 = vpack.c.b16 %v107, %v106
    %vm112 = vcmask 261120
    %v114 = vsel %vm112, %v87, 0
    %v117 = vsel %vm112, %v88, 0
    %119 = vmatprep.subr.bf16.mxu0 0
    %120 = vmatpush1.bf16.msra.mxu0 0
    %121 = vmatprep.subr.bf16.mxu0 0
    %122 = vmatpush1.bf16.msra.mxu0 0
    %123 = vmatprep.subr.bf16.mxu0 0
    %124 = vmatpush1.bf16.msra.mxu0 0
    %125 = vmatprep.subr.bf16.mxu0 0
    %126 = vmatpush1.bf16.msra.mxu0 0
    %127 = vmatprep.subr.bf16.mxu0 0
    %128 = vmatpush1.bf16.msra.mxu0 0
    %129 = vmatprep.subr.bf16.mxu0 0
    %130 = vmatpush1.bf16.msra.mxu0 0
    %131 = vmatprep.subr.bf16.mxu0 0
    %132 = vmatpush1.bf16.msra.mxu0 %v109
    %133 = vmatprep.subr.bf16.mxu0 0
    %134 = vmatpush1.bf16.msra.mxu0 %v108
    %135 = vmatprep.subr.bf16.mxu0 0
    %136 = vmatpush2.bf16.msra.mxu0 0
    %137 = vmatprep.subr.bf16.mxu0 0
    %138 = vmatpush2.bf16.msra.mxu0 0
    %139 = vmatprep.subr.bf16.mxu0 0
    %140 = vmatpush2.bf16.msra.mxu0 0
    %141 = vmatprep.subr.bf16.mxu0 0
    %142 = vmatpush2.bf16.msra.mxu0 0
    %143 = vmatprep.subr.bf16.mxu0 0
    %144 = vmatpush2.bf16.msra.mxu0 0
    %145 = vmatprep.subr.bf16.mxu0 0
    %146 = vmatpush2.bf16.msra.mxu0 0
    %147 = vmatprep.subr.bf16.mxu0 0
    %148 = vmatpush2.bf16.msra.mxu0 0
    %149 = vmatprep.subr.bf16.mxu0 0
    %150 = vmatpush2.bf16.msra.mxu0 0
    %151 = vmatprep.mubr.bf16.mxu0 0
    %152 = vmatmul.mubr.bf16.gmra.mxu0 %v114
    %v153 = vpop.f32.mrf.mxu0
    %v154 = vadd.f32 %v98, %v153
    %v155 = vpop.f32.mrf.mxu0
    %v156 = vpop.f32.mrf.mxu0
    %v157 = vadd.f32 %v98, %v156
    %v158 = vpop.f32.mrf.mxu0
    %159 = vmatprep.mubr.bf16.mxu0 0
    %160 = vmatmul.mubr.bf16.gmra.mxu0 %v117
    %v161 = vpop.f32.mrf.mxu0
    %v162 = vadd.f32 %v98, %v161
    %v163 = vpop.f32.mrf.mxu0
    %v164 = vpop.f32.mrf.mxu0
    %v165 = vadd.f32 %v98, %v164
    %v166 = vpop.f32.mrf.mxu0
    %167 = vdwg.mxu0
    %v168 = vmax.f32 %v154, 0.0
    %v169 = vmax.f32 %v157, 0.0
    %v170 = vmax.f32 %v162, 0.0
    %v171 = vmax.f32 %v165, 0.0
    %v172 = vpack.c.bf16 %v169, %v168
    %v173 = vpack.c.bf16 %v171, %v170
    %v174 = vld [vmem:[#allocation7] sm:$0xf]
    %v175 = vld [vmem:[#allocation7 + $0x4] sm:$0xf]
    %v176 = vld [vmem:[#allocation7 + $0x8] sm:$0xf]
    %v177 = vld [vmem:[#allocation7 + $0xc] sm:$0xf]
    %v178 = vld [vmem:[#allocation7 + $0x10] sm:$0xf]
    %v179 = vld [vmem:[#allocation7 + $0x14] sm:$0xf]
    %v180 = vld [vmem:[#allocation7 + $0x18] sm:$0xf]
    %v181 = vld [vmem:[#allocation7 + $0x1c] sm:$0xf]
    %v182 = vld [vmem:[#allocation7 + $0x20] sm:$0xf]
    %v183 = vld [vmem:[#allocation7 + $0x24] sm:$0xf]
    %v184 = vld [vmem:[#allocation7 + $0x28] sm:$0xf]
    %v185 = vld [vmem:[#allocation7 + $0x2c] sm:$0xf]
    %v186 = vld [vmem:[#allocation7 + $0x30] sm:$0xf]
    %v187 = vld [vmem:[#allocation7 + $0x34] sm:$0xf]
    %v188 = vld [vmem:[#allocation7 + $0x38] sm:$0xf]
    %v189 = vld [vmem:[#allocation7 + $0x3c] sm:$0xf]
    %v190 = vld [vmem:[%s4] sm:$0x1]
    %v192 = vlaneseq
    %v193 = vshrl.u32 %v192, 7
    %v194 = vsub.s32 0, %v193
    %v195 = vrot.slane %v190, %v194
    %v213 = vunpack.c.l.b16 %v174
    %v214 = vunpack.c.l.b16 %v175
    %v215 = vunpack.c.l.b16 %v176
    %v216 = vunpack.c.l.b16 %v177
    %v217 = vunpack.c.l.b16 %v178
    %v218 = vunpack.c.l.b16 %v179
    %v219 = vunpack.c.l.b16 %v180
    %v220 = vunpack.c.l.b16 %v181
    %v221 = vunpack.c.l.b16 %v182
    %v222 = vunpack.c.l.b16 %v183
    %v223 = vunpack.c.l.b16 %v184
    %v224 = vunpack.c.l.b16 %v185
    %v225 = vunpack.c.l.b16 %v186
    %v226 = vunpack.c.l.b16 %v187
    %v227 = vunpack.c.l.b16 %v188
    %v228 = vunpack.c.l.b16 %v189
    %v229 = vpack.c.b16 %v214, %v213
    %v230 = vpack.c.b16 %v216, %v215
    %v231 = vpack.c.b16 %v218, %v217
    %v232 = vpack.c.b16 %v220, %v219
    %v233 = vpack.c.b16 %v222, %v221
    %v234 = vpack.c.b16 %v224, %v223
    %v235 = vpack.c.b16 %v226, %v225
    %v236 = vpack.c.b16 %v228, %v227
    %245 = vmatprep.subr.bf16.mxu0 0
    %246 = vmatpush1.bf16.msra.mxu0 %v236
    %247 = vmatprep.subr.bf16.mxu0 0
    %248 = vmatpush1.bf16.msra.mxu0 %v235
    %249 = vmatprep.subr.bf16.mxu0 0
    %250 = vmatpush1.bf16.msra.mxu0 %v234
    %251 = vmatprep.subr.bf16.mxu0 0
    %252 = vmatpush1.bf16.msra.mxu0 %v233
    %253 = vmatprep.subr.bf16.mxu0 0
    %254 = vmatpush1.bf16.msra.mxu0 %v232
    %255 = vmatprep.subr.bf16.mxu0 0
    %256 = vmatpush1.bf16.msra.mxu0 %v231
    %257 = vmatprep.subr.bf16.mxu0 0
    %258 = vmatpush1.bf16.msra.mxu0 %v230
    %259 = vmatprep.subr.bf16.mxu0 0
    %260 = vmatpush1.bf16.msra.mxu0 %v229
    %261 = vmatprep.subr.bf16.mxu0 0
    %262 = vmatpush2.bf16.msra.mxu0 0
    %263 = vmatprep.subr.bf16.mxu0 0
    %264 = vmatpush2.bf16.msra.mxu0 0
    %265 = vmatprep.subr.bf16.mxu0 0
    %266 = vmatpush2.bf16.msra.mxu0 0
    %267 = vmatprep.subr.bf16.mxu0 0
    %268 = vmatpush2.bf16.msra.mxu0 0
    %269 = vmatprep.subr.bf16.mxu0 0
    %270 = vmatpush2.bf16.msra.mxu0 0
    %271 = vmatprep.subr.bf16.mxu0 0
    %272 = vmatpush2.bf16.msra.mxu0 0
    %273 = vmatprep.subr.bf16.mxu0 0
    %274 = vmatpush2.bf16.msra.mxu0 0
    %275 = vmatprep.subr.bf16.mxu0 0
    %276 = vmatpush2.bf16.msra.mxu0 0
    %277 = vmatprep.mubr.bf16.mxu0 0
    %278 = vmatmul.mubr.bf16.gmra.mxu0 %v172
    %v279 = vpop.f32.mrf.mxu0
    %v280 = vadd.f32 %v195, %v279
    %v281 = vpop.f32.mrf.mxu0
    %v282 = vpop.f32.mrf.mxu0
    %v283 = vadd.f32 %v195, %v282
    %v284 = vpop.f32.mrf.mxu0
    %285 = vmatprep.mubr.bf16.mxu0 0
    %286 = vmatmul.mubr.bf16.gmra.mxu0 %v173
    %v287 = vpop.f32.mrf.mxu0
    %v288 = vadd.f32 %v195, %v287
    %v289 = vpop.f32.mrf.mxu0
    %v290 = vpop.f32.mrf.mxu0
    %v291 = vadd.f32 %v195, %v290
    %v292 = vpop.f32.mrf.mxu0
    %293 = vdwg.mxu0
    %v294 = vmax.f32 %v280, 0.0
    %v295 = vmax.f32 %v283, 0.0
    %v296 = vmax.f32 %v288, 0.0
    %v297 = vmax.f32 %v291, 0.0
    %v298 = vpack.c.bf16 %v295, %v294
    %v299 = vpack.c.bf16 %v297, %v296
    %v300 = vld [vmem:[#allocation8] sm:$0xf]
    %v301 = vld [vmem:[#allocation8 + $0x4] sm:$0xf]
    %v302 = vld [vmem:[#allocation8 + $0x8] sm:$0xf]
    %v303 = vld [vmem:[#allocation8 + $0xc] sm:$0xf]
    %v304 = vld [vmem:[#allocation8 + $0x10] sm:$0xf]
    %v305 = vld [vmem:[#allocation8 + $0x14] sm:$0xf]
    %v306 = vld [vmem:[#allocation8 + $0x18] sm:$0xf]
    %v307 = vld [vmem:[#allocation8 + $0x1c] sm:$0xf]
    %v308 = vld [vmem:[#allocation8 + $0x20] sm:$0xf]
    %v309 = vld [vmem:[#allocation8 + $0x24] sm:$0xf]
    %v310 = vld [vmem:[#allocation8 + $0x28] sm:$0xf]
    %v311 = vld [vmem:[#allocation8 + $0x2c] sm:$0xf]
    %v312 = vld [vmem:[#allocation8 + $0x30] sm:$0xf]
    %v313 = vld [vmem:[#allocation8 + $0x34] sm:$0xf]
    %v314 = vld [vmem:[#allocation8 + $0x38] sm:$0xf]
    %v315 = vld [vmem:[#allocation8 + $0x3c] sm:$0xf]
    %v316 = vld [vmem:[%s6] sm:$0x1]
    %v318 = vlaneseq
    %v319 = vshrl.u32 %v318, 7
    %v320 = vsub.s32 0, %v319
    %v321 = vrot.slane %v316, %v320
    %v339 = vunpack.c.l.b16 %v300
    %v340 = vunpack.c.l.b16 %v301
    %v341 = vunpack.c.l.b16 %v302
    %v342 = vunpack.c.l.b16 %v303
    %v343 = vunpack.c.l.b16 %v304
    %v344 = vunpack.c.l.b16 %v305
    %v345 = vunpack.c.l.b16 %v306
    %v346 = vunpack.c.l.b16 %v307
    %v347 = vunpack.c.l.b16 %v308
    %v348 = vunpack.c.l.b16 %v309
    %v349 = vunpack.c.l.b16 %v310
    %v350 = vunpack.c.l.b16 %v311
    %v351 = vunpack.c.l.b16 %v312
    %v352 = vunpack.c.l.b16 %v313
    %v353 = vunpack.c.l.b16 %v314
    %v354 = vunpack.c.l.b16 %v315
    %v355 = vpack.c.b16 %v340, %v339
    %v356 = vpack.c.b16 %v342, %v341
    %v357 = vpack.c.b16 %v344, %v343
    %v358 = vpack.c.b16 %v346, %v345
    %v359 = vpack.c.b16 %v348, %v347
    %v360 = vpack.c.b16 %v350, %v349
    %v361 = vpack.c.b16 %v352, %v351
    %v362 = vpack.c.b16 %v354, %v353
    %371 = vmatprep.subr.bf16.mxu0 0
    %372 = vmatpush1.bf16.msra.mxu0 %v362
    %373 = vmatprep.subr.bf16.mxu0 0
    %374 = vmatpush1.bf16.msra.mxu0 %v361
    %375 = vmatprep.subr.bf16.mxu0 0
    %376 = vmatpush1.bf16.msra.mxu0 %v360
    %377 = vmatprep.subr.bf16.mxu0 0
    %378 = vmatpush1.bf16.msra.mxu0 %v359
    %379 = vmatprep.subr.bf16.mxu0 0
    %380 = vmatpush1.bf16.msra.mxu0 %v358
    %381 = vmatprep.subr.bf16.mxu0 0
    %382 = vmatpush1.bf16.msra.mxu0 %v357
    %383 = vmatprep.subr.bf16.mxu0 0
    %384 = vmatpush1.bf16.msra.mxu0 %v356
    %385 = vmatprep.subr.bf16.mxu0 0
    %386 = vmatpush1.bf16.msra.mxu0 %v355
    %387 = vmatprep.subr.bf16.mxu0 0
    %388 = vmatpush2.bf16.msra.mxu0 0
    %389 = vmatprep.subr.bf16.mxu0 0
    %390 = vmatpush2.bf16.msra.mxu0 0
    %391 = vmatprep.subr.bf16.mxu0 0
    %392 = vmatpush2.bf16.msra.mxu0 0
    %393 = vmatprep.subr.bf16.mxu0 0
    %394 = vmatpush2.bf16.msra.mxu0 0
    %395 = vmatprep.subr.bf16.mxu0 0
    %396 = vmatpush2.bf16.msra.mxu0 0
    %397 = vmatprep.subr.bf16.mxu0 0
    %398 = vmatpush2.bf16.msra.mxu0 0
    %399 = vmatprep.subr.bf16.mxu0 0
    %400 = vmatpush2.bf16.msra.mxu0 0
    %401 = vmatprep.subr.bf16.mxu0 0
    %402 = vmatpush2.bf16.msra.mxu0 0
    %403 = vmatprep.mubr.bf16.mxu0 0
    %404 = vmatmul.mubr.bf16.gmra.mxu0 %v298
    %v405 = vpop.f32.mrf.mxu0
    %v406 = vadd.f32 %v321, %v405
    %v407 = vpop.f32.mrf.mxu0
    %v408 = vpop.f32.mrf.mxu0
    %v409 = vadd.f32 %v321, %v408
    %v410 = vpop.f32.mrf.mxu0
    %411 = vmatprep.mubr.bf16.mxu0 0
    %412 = vmatmul.mubr.bf16.gmra.mxu0 %v299
    %v413 = vpop.f32.mrf.mxu0
    %v414 = vadd.f32 %v321, %v413
    %v415 = vpop.f32.mrf.mxu0
    %v416 = vpop.f32.mrf.mxu0
    %v417 = vadd.f32 %v321, %v416
    %v418 = vpop.f32.mrf.mxu0
    %419 = vdwg.mxu0
    %v420 = vpack.c.bf16 %v409, %v406
    %v421 = vpack.c.bf16 %v417, %v414
    %v424 = vunpack.c.l.b16 %v420
    %v425 = vunpack.c.h.b16 %v420
    %v426 = vunpack.c.l.b16 %v421
    %v427 = vunpack.c.h.b16 %v421
    %v428 = vpack.c.b16 %v424, %v424
    %v429 = vpack.c.b16 %v425, %v425
    %v430 = vpack.c.b16 %v426, %v426
    %v431 = vpack.c.b16 %v427, %v427
    %436 = vst [vmem:[#allocation10] sm:$0xf] %v428
    %437 = vst [vmem:[#allocation10 + $0x4] sm:$0xf] %v429
    %438 = vst [vmem:[#allocation10 + $0x8] sm:$0xf] %v430
    %439 = vst [vmem:[#allocation10 + $0xc] sm:$0xf] %v431
    // Predicated region
    $region46: #{tpu_custom_call.1} parent=1 // pred_check
      _
    $region47: #{tpu_custom_call.1} parent=1 // pred_check_branch
      %441 = sbr.rel (0) target = $region49
    $region48: #{tpu_custom_call.1} parent=1 // pred_region
      %s443 = ssub.s32 256, 256
      %444 = vsyncadd [#allocation4], %s443
      %s445 = sshll.u32 [#allocation10], 4
      %s446 = int_to_ptr.vmem [resolvable:$true] %s445
      %451 = dma.vmem_to_hbm [thread:$0]  %s446, 256, %s7, [#allocation4], 64, 64, 4
    $region49: #{tpu_custom_call.1} parent=1 // pred_fallthru
      _
    // Predicated region
    $region50: #{tpu_custom_call.1} parent=1 // pred_check
      _
    $region51: #{tpu_custom_call.1} parent=1 // pred_check_branch
      %453 = sbr.rel (0) target = $region53
    $region52: #{tpu_custom_call.1} parent=1 // pred_region
      %454 = dma.done [#allocation4], 256
    $region53: #{tpu_custom_call.1} parent=1 // pred_fallthru
      _
    %455 = vsyncpa [#allocation3], 1
    %456 = vsyncpa [#allocation6], 1
    %457 = vsyncpa [#allocation9], 1
    %458 = vsyncpa [#allocation4], 1

</llo_original>
